<compile_context>
chip_gen: v5e
topology: v5e:2x2
jax: 0.10.0
libtpu: 0.0.40
codegen_flags: <defaults>
</compile_context>

<pallas_src>
import functools

import jax
import jax.numpy as jnp
import numpy as np
from jax.experimental import pallas as pl
from jax.experimental.pallas import tpu as pltpu

LANES = 128


def _round_up(x, m):
    return ((x + m - 1) // m) * m


# --------------------------------------------------------------------------
# Pallas kernel: whole forward pass for one batch tile.
# --------------------------------------------------------------------------
def critic_kernel(s_ref, a_ref, w1s_ref, w1a_ref, b1_ref, w2_ref, b2_ref,
                  w3_ref, b3_ref, out_ref):
    # Layer 1: (state|action) @ block-diag(Ws0, Wa0) expressed as two MXU dots
    # into the same f32 accumulator -> no concat needed anywhere.
    s = s_ref[...].astype(jnp.bfloat16)      # no-op cast when streamed as bf16
    a = a_ref[...].astype(jnp.bfloat16)
    z1 = jnp.dot(s, w1s_ref[...], preferred_element_type=jnp.float32)
    z1 = z1 + jnp.dot(a, w1a_ref[...], preferred_element_type=jnp.float32)
    h1 = jnp.maximum(z1 + b1_ref[...], 0.0).astype(jnp.bfloat16)      # [TB, 128]

    # Layer 2: concat hidden layer (padded to 128 lanes, pad lanes are inert).
    z2 = jnp.dot(h1, w2_ref[...], preferred_element_type=jnp.float32)
    h2 = jnp.maximum(z2 + b2_ref[...], 0.0)                           # [TB, 128] f32

    # Head: 1-wide output on VPU (mul) + XLU (lane reduce); scalar bias from SMEM.
    q = jnp.sum(h2 * w3_ref[...], axis=-1, keepdims=True) + b3_ref[0]
    out_ref[...] = q.astype(out_ref.dtype)


# --------------------------------------------------------------------------
# Wrapper: batch-tiled pallas_call.
# --------------------------------------------------------------------------
def critic_forward(state, action, packed, *, tile_b=4096, min_grid_steps=1):
    """state: [B, obs], action: [B, act] -> Q: [B, 1] (float32).

    min_grid_steps=1 for v5e/v6e (one TC: one big step).
    min_grid_steps=2 for v7x   (two TCs split the "parallel" batch axis).
    """
    B, OBS = state.shape
    ACT = action.shape[1]

    # Stream activations in bf16 (ideally the caller already stores them bf16;
    # this cast is a no-op in that case).
    state = state.astype(jnp.bfloat16)
    action = action.astype(jnp.bfloat16)

    # Tile sizing: as few grid steps as possible (per-step overhead ~0.35 us),
    # but at least `min_grid_steps` balanced steps; batch tile multiple of 8.
    tb = _round_up(pl.cdiv(B, max(min_grid_steps, 1)), 8)
    tb = min(tb, _round_up(tile_b, 8))
    b_pad = _round_up(B, tb)
    if b_pad != B:
        # Only hit when B is not a multiple of the tile; pad rows are sliced off below.
        state = jnp.pad(state, ((0, b_pad - B), (0, 0)))
        action = jnp.pad(action, ((0, b_pad - B), (0, 0)))
    grid = (b_pad // tb,)

    w1s, w1a, b1 = packed["w1s"], packed["w1a"], packed["b1"]
    w2, b2, w3, b3 = packed["w2"], packed["b2"], packed["w3"], packed["b3"]
    H1P = w1s.shape[1]
    H2P = w2.shape[1]

    out = pl.pallas_call(
        critic_kernel,
        out_shape=jax.ShapeDtypeStruct((b_pad, 1), jnp.float32),
        grid=grid,
        in_specs=[
            # activations: tiled along batch (double-buffered HBM->VMEM DMA)
            pl.BlockSpec((tb, OBS), lambda i: (i, 0)),
            pl.BlockSpec((tb, ACT), lambda i: (i, 0)),
            # weights / biases: whole-array blocks, constant index_map -> VMEM-resident
            pl.BlockSpec((OBS, H1P), lambda i: (0, 0)),
            pl.BlockSpec((ACT, H1P), lambda i: (0, 0)),
            pl.BlockSpec((1, H1P), lambda i: (0, 0)),
            pl.BlockSpec((H1P, H2P), lambda i: (0, 0)),
            pl.BlockSpec((1, H2P), lambda i: (0, 0)),
            pl.BlockSpec((1, H2P), lambda i: (0, 0)),
            # head bias: single f32 scalar -> SMEM (no padded VMEM tile / extra DMA)
            pl.BlockSpec(memory_space=pltpu.MemorySpace.SMEM),
        ],
        out_specs=pl.BlockSpec((tb, 1), lambda i: (i, 0)),
        compiler_params=pltpu.CompilerParams(dimension_semantics=("parallel",)),
    )(state, action, w1s, w1a, b1, w2, b2, w3, b3)
    return out[:B]


# --------------------------------------------------------------------------
# Deterministic parameter init (mirrors fanin_init / nn.Linear defaults).
# Weights are stored as (in_features, out_features) == PyTorch weight.T.
# --------------------------------------------------------------------------
def fanin_init_T(key, in_f, out_f, eps=None):
    # NOTE: torch's fanin_init uses weight.size()[0] == out_features as the "fanin"
    # bound -- intentional reproduction of that quirk; do not "fix".
    v = eps if eps is not None else 1.0 / np.sqrt(out_f)
    return jax.random.uniform(key, (in_f, out_f), jnp.float32, minval=-v, maxval=v)


def bias_init(key, in_f, out_f):
    # nn.Linear default bias init: U(-1/sqrt(in_features), 1/sqrt(in_features))
    v = 1.0 / np.sqrt(in_f)
    return jax.random.uniform(key, (1, out_f), jnp.float32, minval=-v, maxval=v)


def make_params(key, obs_size, act_size, s_hidden, a_hidden, c_hidden):
    keys = jax.random.split(key, 8)
    concat_in = s_hidden + a_hidden
    return {
        "ws0": fanin_init_T(keys[0], obs_size, s_hidden),
        "bs0": bias_init(keys[1], obs_size, s_hidden),
        "wa0": fanin_init_T(keys[2], act_size, a_hidden),
        "ba0": bias_init(keys[3], act_size, a_hidden),
        "wc0": fanin_init_T(keys[4], concat_in, c_hidden),
        "bc0": bias_init(keys[5], concat_in, c_hidden),
        "wc1": fanin_init_T(keys[6], c_hidden, 1, eps=0.003),
        "bc1": bias_init(keys[7], c_hidden, 1),
    }


def pack_params(p, obs_size, act_size, s_hidden, a_hidden, c_hidden):
    """Pack per-branch weights into padded, kernel-ready tensors.

    Layer 1 is the block-diagonal fusion of the two branches, stored as its two
    row blocks (state rows / action rows) so the kernel needs no concat at all.
    """
    H1 = s_hidden + a_hidden
    H1P = _round_up(H1, LANES)
    H2P = _round_up(c_hidden, LANES)

    w1s = jnp.zeros((obs_size, H1P), jnp.float32).at[:, :s_hidden].set(p["ws0"])
    w1a = jnp.zeros((act_size, H1P), jnp.float32).at[:, s_hidden:H1].set(p["wa0"])
    b1 = jnp.zeros((1, H1P), jnp.float32)
    b1 = b1.at[:, :s_hidden].set(p["bs0"])
    b1 = b1.at[:, s_hidden:H1].set(p["ba0"])

    # layer 2: concat hidden, zero-padded to 128 lanes (pad rows/cols are inert).
    w2 = jnp.zeros((H1P, H2P), jnp.float32).at[:H1, :c_hidden].set(p["wc0"])
    b2 = jnp.zeros((1, H2P), jnp.float32).at[:, :c_hidden].set(p["bc0"])

    # head as a (1, H2P) row for the VPU dot-product; scalar bias for SMEM.
    w3 = jnp.zeros((1, H2P), jnp.float32).at[:, :c_hidden].set(
        p["wc1"].reshape(1, c_hidden)
    )
    b3 = p["bc1"].reshape(1).astype(jnp.float32)

    return {
        "w1s": w1s.astype(jnp.bfloat16),  # MXU operands in bf16
        "w1a": w1a.astype(jnp.bfloat16),
        "b1": b1,                         # elementwise math stays f32 (v5e-safe)
        "w2": w2.astype(jnp.bfloat16),
        "b2": b2,
        "w3": w3,
        "b3": b3,
    }


# --------------------------------------------------------------------------
# Pure-JAX references for correctness checks.
# --------------------------------------------------------------------------
def critic_ref_f32(state, action, p):
    """Original PyTorch semantics, full f32."""
    h_s = jnp.maximum(state @ p["ws0"] + p["bs0"], 0.0)
    h_a = jnp.maximum(action @ p["wa0"] + p["ba0"], 0.0)
    h = jnp.concatenate([h_s, h_a], axis=1)
    h = jnp.maximum(h @ p["wc0"] + p["bc0"], 0.0)
    return h @ p["wc1"] + p["bc1"]


def critic_ref_packed(state, action, pk):
    """Same math as the kernel (packed weights, bf16 matmuls, f32 accumulation)."""
    s = state.astype(jnp.bfloat16)
    a = action.astype(jnp.bfloat16)
    z1 = jnp.dot(s, pk["w1s"], preferred_element_type=jnp.float32)
    z1 = z1 + jnp.dot(a, pk["w1a"], preferred_element_type=jnp.float32)
    h1 = jnp.maximum(z1 + pk["b1"], 0.0).astype(jnp.bfloat16)
    z2 = jnp.dot(h1, pk["w2"], preferred_element_type=jnp.float32)
    h2 = jnp.maximum(z2 + pk["b2"], 0.0)
    return jnp.sum(h2 * pk["w3"], axis=-1, keepdims=True) + pk["b3"]


if __name__ == "__main__":
    # Shapes consistent with the Critic: obs=16, act=4,
    # Critic_layers = {'s': [32], 'a': [32], 'concat': [32]}.
    # B=256 ~ a typical DDPG replay minibatch.
    B, OBS, ACT = 256, 16, 4
    S_H, A_H, C_H = 32, 32, 32

    key = jax.random.PRNGKey(0)
    k_state, k_action, k_params = jax.random.split(key, 3)

    state_f32 = jax.random.normal(k_state, (B, OBS), jnp.float32)
    action_f32 = jax.random.uniform(k_action, (B, ACT), jnp.float32, minval=-1.0, maxval=1.0)

    # Bandwidth-optimal path: activations stored / streamed as bf16 end-to-end.
    state = state_f32.astype(jnp.bfloat16)
    action = action_f32.astype(jnp.bfloat16)

    params = make_params(k_params, OBS, ACT, S_H, A_H, C_H)
    packed = pack_params(params, OBS, ACT, S_H, A_H, C_H)

    # 1) Default config: one big grid step (v5e/v6e).
    fwd_1 = jax.jit(functools.partial(critic_forward, min_grid_steps=1))
    q1 = jax.block_until_ready(fwd_1(state, action, packed))

    # 2) Two balanced grid steps (v7x megacore path) -- exercises multi-step tiling.
    fwd_2 = jax.jit(functools.partial(critic_forward, min_grid_steps=2))
    q2 = jax.block_until_ready(fwd_2(state, action, packed))

    # Check against the matched-precision (bf16 matmul) reference ...
    q_pk = critic_ref_packed(state, action, packed)
    np.testing.assert_allclose(np.asarray(q1), np.asarray(q_pk), rtol=2e-3, atol=2e-3)
    np.testing.assert_allclose(np.asarray(q2), np.asarray(q_pk), rtol=2e-3, atol=2e-3)

    # ... and against the original full-f32 PyTorch-semantics reference
    # (computed from the same bf16-quantized inputs; documents the accepted
    #  bf16-matmul precision drop).
    q_f32 = critic_ref_f32(state.astype(jnp.float32), action.astype(jnp.float32), params)
    np.testing.assert_allclose(np.asarray(q1), np.asarray(q_f32), rtol=2e-2, atol=2e-2)
    np.testing.assert_allclose(np.asarray(q2), np.asarray(q_f32), rtol=2e-2, atol=2e-2)

    print("KERNEL_OK")
</pallas_src>

<mosaic_0001>
module attributes {stable_mosaic.version = 11 : i64} {
  func.func @critic_kernel(%arg0: i32, %arg1: memref<256x16xbf16, #tpu.memory_space<vmem>>, %arg2: memref<256x4xbf16, #tpu.memory_space<vmem>>, %arg3: memref<16x128xbf16, #tpu.memory_space<vmem>>, %arg4: memref<4x128xbf16, #tpu.memory_space<vmem>>, %arg5: memref<1x128xf32, #tpu.memory_space<vmem>>, %arg6: memref<128x128xbf16, #tpu.memory_space<vmem>>, %arg7: memref<1x128xf32, #tpu.memory_space<vmem>>, %arg8: memref<1x128xf32, #tpu.memory_space<vmem>>, %arg9: memref<1xf32, #tpu.memory_space<smem>>, %arg10: memref<256x1xf32, #tpu.memory_space<vmem>>) attributes {dimension_semantics = [#tpu.dimension_semantics<parallel>], iteration_bounds = array<i64: 1>, scalar_prefetch = 0 : i64, scratch_operands = 0 : i64, tpu.core_type = #tpu.core_type<tc>, window_params = [{transform_indices = @transform_0, window_bounds = array<i64: 256, 16>}, {transform_indices = @transform_1, window_bounds = array<i64: 256, 4>}, {pipeline_mode = #tpu.pipeline_mode<synchronous>, transform_indices = @transform_2, window_bounds = array<i64: 16, 128>}, {pipeline_mode = #tpu.pipeline_mode<synchronous>, transform_indices = @transform_3, window_bounds = array<i64: 4, 128>}, {pipeline_mode = #tpu.pipeline_mode<synchronous>, transform_indices = @transform_4, window_bounds = array<i64: 1, 128>}, {pipeline_mode = #tpu.pipeline_mode<synchronous>, transform_indices = @transform_5, window_bounds = array<i64: 128, 128>}, {pipeline_mode = #tpu.pipeline_mode<synchronous>, transform_indices = @transform_6, window_bounds = array<i64: 1, 128>}, {pipeline_mode = #tpu.pipeline_mode<synchronous>, transform_indices = @transform_7, window_bounds = array<i64: 1, 128>}, {transform_indices = @transform_8, window_bounds = array<i64: 1>}, {transform_indices = @transform_9, window_bounds = array<i64: 256, 1>}]} {
    %c0 = arith.constant 0 : index
    %c0_0 = arith.constant 0 : index
    %0 = vector.load %arg1[%c0, %c0_0] : memref<256x16xbf16, #tpu.memory_space<vmem>>, vector<256x16xbf16>
    %c0_1 = arith.constant 0 : index
    %c0_2 = arith.constant 0 : index
    %1 = vector.load %arg2[%c0_1, %c0_2] : memref<256x4xbf16, #tpu.memory_space<vmem>>, vector<256x4xbf16>
    %c0_3 = arith.constant 0 : index
    %c0_4 = arith.constant 0 : index
    %2 = vector.load %arg3[%c0_3, %c0_4] : memref<16x128xbf16, #tpu.memory_space<vmem>>, vector<16x128xbf16>
    %cst = arith.constant dense<0.000000e+00> : vector<256x128xf32>
    %3 = tpu.matmul %0, %2, %cst {dimension_numbers = #tpu.dot_dimension_numbers<[1], [0], [0], [1], [0, 0, 1, 1], [], []>} : vector<256x16xbf16>, vector<16x128xbf16>, vector<256x128xf32> -> vector<256x128xf32>
    %c0_5 = arith.constant 0 : index
    %c0_6 = arith.constant 0 : index
    %4 = vector.load %arg4[%c0_5, %c0_6] : memref<4x128xbf16, #tpu.memory_space<vmem>>, vector<4x128xbf16>
    %cst_7 = arith.constant dense<0.000000e+00> : vector<256x128xf32>
    %5 = tpu.matmul %1, %4, %cst_7 {dimension_numbers = #tpu.dot_dimension_numbers<[1], [0], [0], [1], [0, 0, 1, 1], [], []>} : vector<256x4xbf16>, vector<4x128xbf16>, vector<256x128xf32> -> vector<256x128xf32>
    %6 = arith.addf %3, %5 : vector<256x128xf32>
    %c0_8 = arith.constant 0 : index
    %c0_9 = arith.constant 0 : index
    %7 = vector.load %arg5[%c0_8, %c0_9] : memref<1x128xf32, #tpu.memory_space<vmem>>, vector<1x128xf32>
    %8 = vector.broadcast %7 : vector<1x128xf32> to vector<256x128xf32>
    %9 = arith.addf %6, %8 : vector<256x128xf32>
    %cst_10 = arith.constant 0.000000e+00 : f32
    %10 = vector.broadcast %cst_10 : f32 to vector<256x128xf32>
    %11 = arith.maximumf %9, %10 : vector<256x128xf32>
    %12 = arith.truncf %11 : vector<256x128xf32> to vector<256x128xbf16>
    %c0_11 = arith.constant 0 : index
    %c0_12 = arith.constant 0 : index
    %13 = vector.load %arg6[%c0_11, %c0_12] : memref<128x128xbf16, #tpu.memory_space<vmem>>, vector<128x128xbf16>
    %cst_13 = arith.constant dense<0.000000e+00> : vector<256x128xf32>
    %14 = tpu.matmul %12, %13, %cst_13 {dimension_numbers = #tpu.dot_dimension_numbers<[1], [0], [0], [1], [0, 0, 1, 1], [], []>} : vector<256x128xbf16>, vector<128x128xbf16>, vector<256x128xf32> -> vector<256x128xf32>
    %c0_14 = arith.constant 0 : index
    %c0_15 = arith.constant 0 : index
    %15 = vector.load %arg7[%c0_14, %c0_15] : memref<1x128xf32, #tpu.memory_space<vmem>>, vector<1x128xf32>
    %16 = vector.broadcast %15 : vector<1x128xf32> to vector<256x128xf32>
    %17 = arith.addf %14, %16 : vector<256x128xf32>
    %cst_16 = arith.constant 0.000000e+00 : f32
    %18 = vector.broadcast %cst_16 : f32 to vector<256x128xf32>
    %19 = arith.maximumf %17, %18 : vector<256x128xf32>
    %c0_17 = arith.constant 0 : index
    %c0_18 = arith.constant 0 : index
    %20 = vector.load %arg8[%c0_17, %c0_18] : memref<1x128xf32, #tpu.memory_space<vmem>>, vector<1x128xf32>
    %21 = vector.broadcast %20 : vector<1x128xf32> to vector<256x128xf32>
    %22 = arith.mulf %19, %21 : vector<256x128xf32>
    %cst_19 = arith.constant dense<0.000000e+00> : vector<256xf32>
    %23 = vector.multi_reduction <add>, %22, %cst_19 [1] : vector<256x128xf32> to vector<256xf32>
    %24 = vector.shape_cast %23 : vector<256xf32> to vector<256x1xf32>
    %c0_20 = arith.constant 0 : index
    %25 = memref.load %arg9[%c0_20] : memref<1xf32, #tpu.memory_space<smem>>
    %26 = vector.broadcast %25 : f32 to vector<256x1xf32>
    %27 = arith.addf %24, %26 : vector<256x1xf32>
    %c0_21 = arith.constant 0 : index
    %c0_22 = arith.constant 0 : index
    %28 = vector.load %arg10[%c0_21, %c0_22] : memref<256x1xf32, #tpu.memory_space<vmem>>, vector<256x1xf32>
    tpu.vector_store %arg10[%c0_21, %c0_22], %27 {strides = array<i32>} : memref<256x1xf32, #tpu.memory_space<vmem>>, vector<256x1xf32>,
    return
  }
  func.func @transform_0(%arg0: i32) -> (i32, i32) {
    %c0_i32 = arith.constant 0 : i32
    %c0_i32_0 = arith.constant 0 : i32
    return %arg0, %c0_i32 : i32, i32
  }
  func.func @transform_1(%arg0: i32) -> (i32, i32) {
    %c0_i32 = arith.constant 0 : i32
    %c0_i32_0 = arith.constant 0 : i32
    return %arg0, %c0_i32 : i32, i32
  }
  func.func @transform_2(%arg0: i32) -> (i32, i32) {
    %c0_i32 = arith.constant 0 : i32
    %c0_i32_0 = arith.constant 0 : i32
    %c0_i32_1 = arith.constant 0 : i32
    return %c0_i32, %c0_i32_0 : i32, i32
  }
  func.func @transform_3(%arg0: i32) -> (i32, i32) {
    %c0_i32 = arith.constant 0 : i32
    %c0_i32_0 = arith.constant 0 : i32
    %c0_i32_1 = arith.constant 0 : i32
    return %c0_i32, %c0_i32_0 : i32, i32
  }
  func.func @transform_4(%arg0: i32) -> (i32, i32) {
    %c0_i32 = arith.constant 0 : i32
    %c0_i32_0 = arith.constant 0 : i32
    %c0_i32_1 = arith.constant 0 : i32
    return %c0_i32, %c0_i32_0 : i32, i32
  }
  func.func @transform_5(%arg0: i32) -> (i32, i32) {
    %c0_i32 = arith.constant 0 : i32
    %c0_i32_0 = arith.constant 0 : i32
    %c0_i32_1 = arith.constant 0 : i32
    return %c0_i32, %c0_i32_0 : i32, i32
  }
  func.func @transform_6(%arg0: i32) -> (i32, i32) {
    %c0_i32 = arith.constant 0 : i32
    %c0_i32_0 = arith.constant 0 : i32
    %c0_i32_1 = arith.constant 0 : i32
    return %c0_i32, %c0_i32_0 : i32, i32
  }
  func.func @transform_7(%arg0: i32) -> (i32, i32) {
    %c0_i32 = arith.constant 0 : i32
    %c0_i32_0 = arith.constant 0 : i32
    %c0_i32_1 = arith.constant 0 : i32
    return %c0_i32, %c0_i32_0 : i32, i32
  }
  func.func @transform_8(%arg0: i32) -> i32 {
    %c0_i32 = arith.constant 0 : i32
    %c0_i32_0 = arith.constant 0 : i32
    return %c0_i32 : i32
  }
  func.func @transform_9(%arg0: i32) -> (i32, i32) {
    %c0_i32 = arith.constant 0 : i32
    %c0_i32_0 = arith.constant 0 : i32
    return %arg0, %c0_i32 : i32, i32
  }
}

</mosaic_0001>

<llo_original>
// kernel: critic_forward.1
$region0: #{critic_forward.1}
  #allocation0 [shape = 'u32[]', space=smem, size = 0x4, offset = 0x4, fixed_abs, tag = 'smem constant byte address 0x4 - core index']
  #allocation1 [shape = 'u32[72,128]{1,0:T(1,128)}', space=vmem, size = 0x9000, scoped, tag = 'internal scratch']
  #allocation2 [shape = 'f32[1]{0:T(128)S(6)}', space=smem, size = 0x200, scoped, tag = 'scoped memory for critic_forward.1']
  %s0 = inlined_call_operand.vmem [shape: bf16[256,16], index: 0, kind: input, shape index: {}]
  %s1 = inlined_call_operand.vmem [shape: bf16[256,4], index: 1, kind: input, shape index: {}]
  %s2 = inlined_call_operand.vmem [shape: bf16[16,128], index: 2, kind: input, shape index: {}]
  %s3 = inlined_call_operand.vmem [shape: bf16[4,128], index: 3, kind: input, shape index: {}]
  %s4 = inlined_call_operand.vmem [shape: f32[1,128], index: 4, kind: input, shape index: {}]
  %s5 = inlined_call_operand.vmem [shape: bf16[128,128], index: 5, kind: input, shape index: {}]
  %s6 = inlined_call_operand.vmem [shape: f32[1,128], index: 6, kind: input, shape index: {}]
  %s7 = inlined_call_operand.vmem [shape: f32[1,128], index: 7, kind: input, shape index: {}]
  %s8 = inlined_call_operand.<no memory space> [shape: f32[1], index: 8, kind: input, shape index: {}]
  %s9 = inlined_call_operand.vmem [shape: f32[256,1], index: 9, kind: output, shape index: {}]
  %s10 = sld [smem:[#allocation0]]
  $region46: #{critic_forward.1} parent=0
    _
  %s12 = ssub.s32 1, %s10
  %s13 = scalar_select 0, %s12, %s10
  %14 = sst [smem:[#allocation2]] %s8
  // Predicated region
  $region2: #{critic_forward.1} parent=0 // pred_check
    _
  $region3: #{critic_forward.1} parent=0 // pred_check_branch
    %16 = sbr.rel (0) target = $region5
  $region4: #{critic_forward.1} parent=0 // pred_region
    _
  $region5: #{critic_forward.1} parent=0 // pred_fallthru
    _
  // Predicated region
  $region6: #{critic_forward.1} parent=0 // pred_check
    _
  $region7: #{critic_forward.1} parent=0 // pred_check_branch
    %18 = sbr.rel (0) target = $region9
  $region8: #{critic_forward.1} parent=0 // pred_region
    _
  $region9: #{critic_forward.1} parent=0 // pred_fallthru
    _
  // Predicated region
  $region10: #{critic_forward.1} parent=0 // pred_check
    _
  $region11: #{critic_forward.1} parent=0 // pred_check_branch
    %20 = sbr.rel (0) target = $region13
  $region12: #{critic_forward.1} parent=0 // pred_region
    _
  $region13: #{critic_forward.1} parent=0 // pred_fallthru
    _
  // Predicated region
  $region14: #{critic_forward.1} parent=0 // pred_check
    _
  $region15: #{critic_forward.1} parent=0 // pred_check_branch
    %22 = sbr.rel (0) target = $region17
  $region16: #{critic_forward.1} parent=0 // pred_region
    _
  $region17: #{critic_forward.1} parent=0 // pred_fallthru
    _
  // Predicated region
  $region18: #{critic_forward.1} parent=0 // pred_check
    _
  $region19: #{critic_forward.1} parent=0 // pred_check_branch
    %24 = sbr.rel (0) target = $region21
  $region20: #{critic_forward.1} parent=0 // pred_region
    _
  $region21: #{critic_forward.1} parent=0 // pred_fallthru
    _
  // Predicated region
  $region22: #{critic_forward.1} parent=0 // pred_check
    _
  $region23: #{critic_forward.1} parent=0 // pred_check_branch
    %26 = sbr.rel (0) target = $region25
  $region24: #{critic_forward.1} parent=0 // pred_region
    _
  $region25: #{critic_forward.1} parent=0 // pred_fallthru
    _
  // Predicated region
  $region26: #{critic_forward.1} parent=0 // pred_check
    _
  $region27: #{critic_forward.1} parent=0 // pred_check_branch
    %28 = sbr.rel (0) target = $region29
  $region28: #{critic_forward.1} parent=0 // pred_region
    _
  $region29: #{critic_forward.1} parent=0 // pred_fallthru
    _
  // Predicated region
  $region30: #{critic_forward.1} parent=0 // pred_check
    _
  $region31: #{critic_forward.1} parent=0 // pred_check_branch
    %30 = sbr.rel (0) target = $region33
  $region32: #{critic_forward.1} parent=0 // pred_region
    _
  $region33: #{critic_forward.1} parent=0 // pred_fallthru
    _
  // Predicated region
  $region34: #{critic_forward.1} parent=0 // pred_check
    _
  $region35: #{critic_forward.1} parent=0 // pred_check_branch
    %32 = sbr.rel (0) target = $region37
  $region36: #{critic_forward.1} parent=0 // pred_region
    _
  $region37: #{critic_forward.1} parent=0 // pred_fallthru
    _
  %v34 = vld [vmem:[%s0] sm:$0xf]
  %v35 = vld [vmem:[%s0 + $0x4] sm:$0xf]
  %v36 = vld [vmem:[%s0 + $0x8] sm:$0xf]
  %v37 = vld [vmem:[%s0 + $0xc] sm:$0xf]
  %v38 = vld [vmem:[%s0 + $0x10] sm:$0xf]
  %v39 = vld [vmem:[%s0 + $0x14] sm:$0xf]
  %v40 = vld [vmem:[%s0 + $0x18] sm:$0xf]
  %v41 = vld [vmem:[%s0 + $0x1c] sm:$0xf]
  %v42 = vld [vmem:[%s0 + $0x20] sm:$0xf]
  %v43 = vld [vmem:[%s0 + $0x24] sm:$0xf]
  %v44 = vld [vmem:[%s0 + $0x28] sm:$0xf]
  %v45 = vld [vmem:[%s0 + $0x2c] sm:$0xf]
  %v46 = vld [vmem:[%s0 + $0x30] sm:$0xf]
  %v47 = vld [vmem:[%s0 + $0x34] sm:$0xf]
  %v48 = vld [vmem:[%s0 + $0x38] sm:$0xf]
  %v49 = vld [vmem:[%s0 + $0x3c] sm:$0xf]
  %v50 = vld [vmem:[%s0 + $0x40] sm:$0xf]
  %v51 = vld [vmem:[%s0 + $0x44] sm:$0xf]
  %v52 = vld [vmem:[%s0 + $0x48] sm:$0xf]
  %v53 = vld [vmem:[%s0 + $0x4c] sm:$0xf]
  %v54 = vld [vmem:[%s0 + $0x50] sm:$0xf]
  %v55 = vld [vmem:[%s0 + $0x54] sm:$0xf]
  %v56 = vld [vmem:[%s0 + $0x58] sm:$0xf]
  %v57 = vld [vmem:[%s0 + $0x5c] sm:$0xf]
  %v58 = vld [vmem:[%s0 + $0x60] sm:$0xf]
  %v59 = vld [vmem:[%s0 + $0x64] sm:$0xf]
  %v60 = vld [vmem:[%s0 + $0x68] sm:$0xf]
  %v61 = vld [vmem:[%s0 + $0x6c] sm:$0xf]
  %v62 = vld [vmem:[%s0 + $0x70] sm:$0xf]
  %v63 = vld [vmem:[%s0 + $0x74] sm:$0xf]
  %v64 = vld [vmem:[%s0 + $0x78] sm:$0xf]
  %v65 = vld [vmem:[%s0 + $0x7c] sm:$0xf]
  %v66 = vld [vmem:[%s1] sm:$0xf]
  %v67 = vld [vmem:[%s1 + $0x4] sm:$0xf]
  %v68 = vld [vmem:[%s1 + $0x8] sm:$0xf]
  %v69 = vld [vmem:[%s1 + $0xc] sm:$0xf]
  %v70 = vld [vmem:[%s1 + $0x10] sm:$0xf]
  %v71 = vld [vmem:[%s1 + $0x14] sm:$0xf]
  %v72 = vld [vmem:[%s1 + $0x18] sm:$0xf]
  %v73 = vld [vmem:[%s1 + $0x1c] sm:$0xf]
  %v74 = vld [vmem:[%s1 + $0x20] sm:$0xf]
  %v75 = vld [vmem:[%s1 + $0x24] sm:$0xf]
  %v76 = vld [vmem:[%s1 + $0x28] sm:$0xf]
  %v77 = vld [vmem:[%s1 + $0x2c] sm:$0xf]
  %v78 = vld [vmem:[%s1 + $0x30] sm:$0xf]
  %v79 = vld [vmem:[%s1 + $0x34] sm:$0xf]
  %v80 = vld [vmem:[%s1 + $0x38] sm:$0xf]
  %v81 = vld [vmem:[%s1 + $0x3c] sm:$0xf]
  %v82 = vld [vmem:[%s1 + $0x40] sm:$0xf]
  %v83 = vld [vmem:[%s1 + $0x44] sm:$0xf]
  %v84 = vld [vmem:[%s1 + $0x48] sm:$0xf]
  %v85 = vld [vmem:[%s1 + $0x4c] sm:$0xf]
  %v86 = vld [vmem:[%s1 + $0x50] sm:$0xf]
  %v87 = vld [vmem:[%s1 + $0x54] sm:$0xf]
  %v88 = vld [vmem:[%s1 + $0x58] sm:$0xf]
  %v89 = vld [vmem:[%s1 + $0x5c] sm:$0xf]
  %v90 = vld [vmem:[%s1 + $0x60] sm:$0xf]
  %v91 = vld [vmem:[%s1 + $0x64] sm:$0xf]
  %v92 = vld [vmem:[%s1 + $0x68] sm:$0xf]
  %v93 = vld [vmem:[%s1 + $0x6c] sm:$0xf]
  %v94 = vld [vmem:[%s1 + $0x70] sm:$0xf]
  %v95 = vld [vmem:[%s1 + $0x74] sm:$0xf]
  %v96 = vld [vmem:[%s1 + $0x78] sm:$0xf]
  %v97 = vld [vmem:[%s1 + $0x7c] sm:$0xf]
  %v98 = vld [vmem:[%s2] sm:$0xf]
  %v99 = vld [vmem:[%s2 + $0x4] sm:$0xf]
  %v100 = vld [vmem:[%s3] sm:$0x3]
  %v133 = vunpack.c.l.b16 %v66
  %v134 = vunpack.c.l.b16 %v67
  %v135 = vunpack.c.l.b16 %v68
  %v136 = vunpack.c.l.b16 %v69
  %v137 = vunpack.c.l.b16 %v70
  %v138 = vunpack.c.l.b16 %v71
  %v139 = vunpack.c.l.b16 %v72
  %v140 = vunpack.c.l.b16 %v73
  %v141 = vunpack.c.l.b16 %v74
  %v142 = vunpack.c.l.b16 %v75
  %v143 = vunpack.c.l.b16 %v76
  %v144 = vunpack.c.l.b16 %v77
  %v145 = vunpack.c.l.b16 %v78
  %v146 = vunpack.c.l.b16 %v79
  %v147 = vunpack.c.l.b16 %v80
  %v148 = vunpack.c.l.b16 %v81
  %v149 = vunpack.c.l.b16 %v82
  %v150 = vunpack.c.l.b16 %v83
  %v151 = vunpack.c.l.b16 %v84
  %v152 = vunpack.c.l.b16 %v85
  %v153 = vunpack.c.l.b16 %v86
  %v154 = vunpack.c.l.b16 %v87
  %v155 = vunpack.c.l.b16 %v88
  %v156 = vunpack.c.l.b16 %v89
  %v157 = vunpack.c.l.b16 %v90
  %v158 = vunpack.c.l.b16 %v91
  %v159 = vunpack.c.l.b16 %v92
  %v160 = vunpack.c.l.b16 %v93
  %v161 = vunpack.c.l.b16 %v94
  %v162 = vunpack.c.l.b16 %v95
  %v163 = vunpack.c.l.b16 %v96
  %v164 = vunpack.c.l.b16 %v97
  %v165 = vpack.c.b16 %v134, %v133
  %v166 = vpack.c.b16 %v136, %v135
  %v167 = vpack.c.b16 %v138, %v137
  %v168 = vpack.c.b16 %v140, %v139
  %v169 = vpack.c.b16 %v142, %v141
  %v170 = vpack.c.b16 %v144, %v143
  %v171 = vpack.c.b16 %v146, %v145
  %v172 = vpack.c.b16 %v148, %v147
  %v173 = vpack.c.b16 %v150, %v149
  %v174 = vpack.c.b16 %v152, %v151
  %v175 = vpack.c.b16 %v154, %v153
  %v176 = vpack.c.b16 %v156, %v155
  %v177 = vpack.c.b16 %v158, %v157
  %v178 = vpack.c.b16 %v160, %v159
  %v179 = vpack.c.b16 %v162, %v161
  %v180 = vpack.c.b16 %v164, %v163
  %vm181 = vcmask 31744
  %v183 = vsel %vm181, %v165, 0
  %v186 = vsel %vm181, %v166, 0
  %v189 = vsel %vm181, %v167, 0
  %v192 = vsel %vm181, %v168, 0
  %v195 = vsel %vm181, %v169, 0
  %v198 = vsel %vm181, %v170, 0
  %v201 = vsel %vm181, %v171, 0
  %v204 = vsel %vm181, %v172, 0
  %v207 = vsel %vm181, %v173, 0
  %v210 = vsel %vm181, %v174, 0
  %v213 = vsel %vm181, %v175, 0
  %v216 = vsel %vm181, %v176, 0
  %v219 = vsel %vm181, %v177, 0
  %v222 = vsel %vm181, %v178, 0
  %v225 = vsel %vm181, %v179, 0
  %v228 = vsel %vm181, %v180, 0
  %vm230 = vcmask 1041408
  %v232 = vsel %vm230, %v100, 0
  %234 = vmatpush.bf16.msra.mxu0 0
  %235 = vmatpush.bf16.msra.mxu0 0
  %236 = vmatpush.bf16.msra.mxu0 0
  %237 = vmatpush.bf16.msra.mxu0 0
  %238 = vmatpush.bf16.msra.mxu0 0
  %239 = vmatpush.bf16.msra.mxu0 0
  %240 = vmatpush.bf16.msra.mxu0 0
  %241 = vmatpush.bf16.msra.mxu0 %v232
  %242 = vmatmul.bf16.gmra.mxu0 %v183
  %v243 = vpop.f32.mrf.mxu0
  %v244 = vadd.f32 0.0, %v243
  %v245 = vpop.f32.mrf.mxu0
  %v246 = vadd.f32 0.0, %v245
  %247 = vmatmul.bf16.gmra.mxu0 %v186
  %v248 = vpop.f32.mrf.mxu0
  %v249 = vadd.f32 0.0, %v248
  %v250 = vpop.f32.mrf.mxu0
  %v251 = vadd.f32 0.0, %v250
  %252 = vmatmul.bf16.gmra.mxu0 %v189
  %v253 = vpop.f32.mrf.mxu0
  %v254 = vadd.f32 0.0, %v253
  %v255 = vpop.f32.mrf.mxu0
  %v256 = vadd.f32 0.0, %v255
  %257 = vmatmul.bf16.gmra.mxu0 %v192
  %v258 = vpop.f32.mrf.mxu0
  %v259 = vadd.f32 0.0, %v258
  %v260 = vpop.f32.mrf.mxu0
  %v261 = vadd.f32 0.0, %v260
  %262 = vmatmul.bf16.gmra.mxu0 %v195
  %v263 = vpop.f32.mrf.mxu0
  %v264 = vadd.f32 0.0, %v263
  %v265 = vpop.f32.mrf.mxu0
  %v266 = vadd.f32 0.0, %v265
  %267 = vmatmul.bf16.gmra.mxu0 %v198
  %v268 = vpop.f32.mrf.mxu0
  %v269 = vadd.f32 0.0, %v268
  %v270 = vpop.f32.mrf.mxu0
  %v271 = vadd.f32 0.0, %v270
  %272 = vmatmul.bf16.gmra.mxu0 %v201
  %v273 = vpop.f32.mrf.mxu0
  %v274 = vadd.f32 0.0, %v273
  %v275 = vpop.f32.mrf.mxu0
  %v276 = vadd.f32 0.0, %v275
  %277 = vmatmul.bf16.gmra.mxu0 %v204
  %v278 = vpop.f32.mrf.mxu0
  %v279 = vadd.f32 0.0, %v278
  %v280 = vpop.f32.mrf.mxu0
  %v281 = vadd.f32 0.0, %v280
  %282 = vmatmul.bf16.gmra.mxu0 %v207
  %v283 = vpop.f32.mrf.mxu0
  %v284 = vadd.f32 0.0, %v283
  %v285 = vpop.f32.mrf.mxu0
  %v286 = vadd.f32 0.0, %v285
  %287 = vmatmul.bf16.gmra.mxu0 %v210
  %v288 = vpop.f32.mrf.mxu0
  %v289 = vadd.f32 0.0, %v288
  %v290 = vpop.f32.mrf.mxu0
  %v291 = vadd.f32 0.0, %v290
  %292 = vmatmul.bf16.gmra.mxu0 %v213
  %v293 = vpop.f32.mrf.mxu0
  %v294 = vadd.f32 0.0, %v293
  %v295 = vpop.f32.mrf.mxu0
  %v296 = vadd.f32 0.0, %v295
  %297 = vmatmul.bf16.gmra.mxu0 %v216
  %v298 = vpop.f32.mrf.mxu0
  %v299 = vadd.f32 0.0, %v298
  %v300 = vpop.f32.mrf.mxu0
  %v301 = vadd.f32 0.0, %v300
  %302 = vmatmul.bf16.gmra.mxu0 %v219
  %v303 = vpop.f32.mrf.mxu0
  %v304 = vadd.f32 0.0, %v303
  %v305 = vpop.f32.mrf.mxu0
  %v306 = vadd.f32 0.0, %v305
  %307 = vmatmul.bf16.gmra.mxu0 %v222
  %v308 = vpop.f32.mrf.mxu0
  %v309 = vadd.f32 0.0, %v308
  %v310 = vpop.f32.mrf.mxu0
  %v311 = vadd.f32 0.0, %v310
  %312 = vmatmul.bf16.gmra.mxu0 %v225
  %v313 = vpop.f32.mrf.mxu0
  %v314 = vadd.f32 0.0, %v313
  %v315 = vpop.f32.mrf.mxu0
  %v316 = vadd.f32 0.0, %v315
  %317 = vmatmul.bf16.gmra.mxu0 %v228
  %v318 = vpop.f32.mrf.mxu0
  %v319 = vadd.f32 0.0, %v318
  %v320 = vpop.f32.mrf.mxu0
  %v321 = vadd.f32 0.0, %v320
  %322 = vdwg.mxu0
  %v355 = vunpack.c.l.b16 %v34
  %v356 = vunpack.c.l.b16 %v35
  %v357 = vunpack.c.l.b16 %v36
  %v358 = vunpack.c.l.b16 %v37
  %v359 = vunpack.c.l.b16 %v38
  %v360 = vunpack.c.l.b16 %v39
  %v361 = vunpack.c.l.b16 %v40
  %v362 = vunpack.c.l.b16 %v41
  %v363 = vunpack.c.l.b16 %v42
  %v364 = vunpack.c.l.b16 %v43
  %v365 = vunpack.c.l.b16 %v44
  %v366 = vunpack.c.l.b16 %v45
  %v367 = vunpack.c.l.b16 %v46
  %v368 = vunpack.c.l.b16 %v47
  %v369 = vunpack.c.l.b16 %v48
  %v370 = vunpack.c.l.b16 %v49
  %v371 = vunpack.c.l.b16 %v50
  %v372 = vunpack.c.l.b16 %v51
  %v373 = vunpack.c.l.b16 %v52
  %v374 = vunpack.c.l.b16 %v53
  %v375 = vunpack.c.l.b16 %v54
  %v376 = vunpack.c.l.b16 %v55
  %v377 = vunpack.c.l.b16 %v56
  %v378 = vunpack.c.l.b16 %v57
  %v379 = vunpack.c.l.b16 %v58
  %v380 = vunpack.c.l.b16 %v59
  %v381 = vunpack.c.l.b16 %v60
  %v382 = vunpack.c.l.b16 %v61
  %v383 = vunpack.c.l.b16 %v62
  %v384 = vunpack.c.l.b16 %v63
  %v385 = vunpack.c.l.b16 %v64
  %v386 = vunpack.c.l.b16 %v65
  %v387 = vpack.c.b16 %v356, %v355
  %v388 = vpack.c.b16 %v358, %v357
  %v389 = vpack.c.b16 %v360, %v359
  %v390 = vpack.c.b16 %v362, %v361
  %v391 = vpack.c.b16 %v364, %v363
  %v392 = vpack.c.b16 %v366, %v365
  %v393 = vpack.c.b16 %v368, %v367
  %v394 = vpack.c.b16 %v370, %v369
  %v395 = vpack.c.b16 %v372, %v371
  %v396 = vpack.c.b16 %v374, %v373
  %v397 = vpack.c.b16 %v376, %v375
  %v398 = vpack.c.b16 %v378, %v377
  %v399 = vpack.c.b16 %v380, %v379
  %v400 = vpack.c.b16 %v382, %v381
  %v401 = vpack.c.b16 %v384, %v383
  %v402 = vpack.c.b16 %v386, %v385
  %v405 = vunpack.c.l.b16 %v98
  %v406 = vunpack.c.l.b16 %v99
  %v407 = vpack.c.b16 %v406, %v405
  %vm409 = vcmask 130048
  %v411 = vsel %vm409, %v387, 0
  %v414 = vsel %vm409, %v388, 0
  %v417 = vsel %vm409, %v389, 0
  %v420 = vsel %vm409, %v390, 0
  %v423 = vsel %vm409, %v391, 0
  %v426 = vsel %vm409, %v392, 0
  %v429 = vsel %vm409, %v393, 0
  %v432 = vsel %vm409, %v394, 0
  %v435 = vsel %vm409, %v395, 0
  %v438 = vsel %vm409, %v396, 0
  %v441 = vsel %vm409, %v397, 0
  %v444 = vsel %vm409, %v398, 0
  %v447 = vsel %vm409, %v399, 0
  %v450 = vsel %vm409, %v400, 0
  %v453 = vsel %vm409, %v401, 0
  %v456 = vsel %vm409, %v402, 0
  %458 = vmatpush.bf16.msra.mxu0 0
  %459 = vmatpush.bf16.msra.mxu0 0
  %460 = vmatpush.bf16.msra.mxu0 0
  %461 = vmatpush.bf16.msra.mxu0 0
  %462 = vmatpush.bf16.msra.mxu0 0
  %463 = vmatpush.bf16.msra.mxu0 0
  %464 = vmatpush.bf16.msra.mxu0 0
  %465 = vmatpush.bf16.msra.mxu0 %v407
  %466 = vmatmul.bf16.gmra.mxu0 %v411
  %v467 = vpop.f32.mrf.mxu0
  %v468 = vadd.f32 %v244, %v467
  %v469 = vpop.f32.mrf.mxu0
  %v470 = vadd.f32 %v246, %v469
  %471 = vmatmul.bf16.gmra.mxu0 %v414
  %v472 = vpop.f32.mrf.mxu0
  %v473 = vadd.f32 %v249, %v472
  %v474 = vpop.f32.mrf.mxu0
  %v475 = vadd.f32 %v251, %v474
  %476 = vmatmul.bf16.gmra.mxu0 %v417
  %v477 = vpop.f32.mrf.mxu0
  %v478 = vadd.f32 %v254, %v477
  %v479 = vpop.f32.mrf.mxu0
  %v480 = vadd.f32 %v256, %v479
  %481 = vmatmul.bf16.gmra.mxu0 %v420
  %v482 = vpop.f32.mrf.mxu0
  %v483 = vadd.f32 %v259, %v482
  %v484 = vpop.f32.mrf.mxu0
  %v485 = vadd.f32 %v261, %v484
  %486 = vmatmul.bf16.gmra.mxu0 %v423
  %v487 = vpop.f32.mrf.mxu0
  %v488 = vadd.f32 %v264, %v487
  %v489 = vpop.f32.mrf.mxu0
  %v490 = vadd.f32 %v266, %v489
  %491 = vmatmul.bf16.gmra.mxu0 %v426
  %v492 = vpop.f32.mrf.mxu0
  %v493 = vadd.f32 %v269, %v492
  %v494 = vpop.f32.mrf.mxu0
  %v495 = vadd.f32 %v271, %v494
  %496 = vmatmul.bf16.gmra.mxu0 %v429
  %v497 = vpop.f32.mrf.mxu0
  %v498 = vadd.f32 %v274, %v497
  %v499 = vpop.f32.mrf.mxu0
  %v500 = vadd.f32 %v276, %v499
  %501 = vmatmul.bf16.gmra.mxu0 %v432
  %v502 = vpop.f32.mrf.mxu0
  %v503 = vadd.f32 %v279, %v502
  %v504 = vpop.f32.mrf.mxu0
  %v505 = vadd.f32 %v281, %v504
  %506 = vmatmul.bf16.gmra.mxu0 %v435
  %v507 = vpop.f32.mrf.mxu0
  %v508 = vadd.f32 %v284, %v507
  %v509 = vpop.f32.mrf.mxu0
  %v510 = vadd.f32 %v286, %v509
  %511 = vmatmul.bf16.gmra.mxu0 %v438
  %v512 = vpop.f32.mrf.mxu0
  %v513 = vadd.f32 %v289, %v512
  %v514 = vpop.f32.mrf.mxu0
  %v515 = vadd.f32 %v291, %v514
  %516 = vmatmul.bf16.gmra.mxu0 %v441
  %v517 = vpop.f32.mrf.mxu0
  %v518 = vadd.f32 %v294, %v517
  %v519 = vpop.f32.mrf.mxu0
  %v520 = vadd.f32 %v296, %v519
  %521 = vmatmul.bf16.gmra.mxu0 %v444
  %v522 = vpop.f32.mrf.mxu0
  %v523 = vadd.f32 %v299, %v522
  %v524 = vpop.f32.mrf.mxu0
  %v525 = vadd.f32 %v301, %v524
  %526 = vmatmul.bf16.gmra.mxu0 %v447
  %v527 = vpop.f32.mrf.mxu0
  %v528 = vadd.f32 %v304, %v527
  %v529 = vpop.f32.mrf.mxu0
  %v530 = vadd.f32 %v306, %v529
  %531 = vmatmul.bf16.gmra.mxu0 %v450
  %v532 = vpop.f32.mrf.mxu0
  %v533 = vadd.f32 %v309, %v532
  %v534 = vpop.f32.mrf.mxu0
  %v535 = vadd.f32 %v311, %v534
  %536 = vmatmul.bf16.gmra.mxu0 %v453
  %v537 = vpop.f32.mrf.mxu0
  %v538 = vadd.f32 %v314, %v537
  %v539 = vpop.f32.mrf.mxu0
  %v540 = vadd.f32 %v316, %v539
  %541 = vmatmul.bf16.gmra.mxu0 %v456
  %v542 = vpop.f32.mrf.mxu0
  %v543 = vadd.f32 %v319, %v542
  %v544 = vpop.f32.mrf.mxu0
  %v545 = vadd.f32 %v321, %v544
  %546 = vdwg.mxu0
  %v547 = vld [vmem:[%s4] sm:$0x1]
  %v549 = vperm.slane %v547, 0
  %v551 = vadd.f32 %v468, %v549
  %v552 = vadd.f32 %v470, %v549
  %v553 = vadd.f32 %v473, %v549
  %v554 = vadd.f32 %v475, %v549
  %v555 = vadd.f32 %v478, %v549
  %v556 = vadd.f32 %v480, %v549
  %v557 = vadd.f32 %v483, %v549
  %v558 = vadd.f32 %v485, %v549
  %v559 = vadd.f32 %v488, %v549
  %v560 = vadd.f32 %v490, %v549
  %v561 = vadd.f32 %v493, %v549
  %v562 = vadd.f32 %v495, %v549
  %v563 = vadd.f32 %v498, %v549
  %v564 = vadd.f32 %v500, %v549
  %v565 = vadd.f32 %v503, %v549
  %v566 = vadd.f32 %v505, %v549
  %v567 = vadd.f32 %v508, %v549
  %v568 = vadd.f32 %v510, %v549
  %v569 = vadd.f32 %v513, %v549
  %v570 = vadd.f32 %v515, %v549
  %v571 = vadd.f32 %v518, %v549
  %v572 = vadd.f32 %v520, %v549
  %v573 = vadd.f32 %v523, %v549
  %v574 = vadd.f32 %v525, %v549
  %v575 = vadd.f32 %v528, %v549
  %v576 = vadd.f32 %v530, %v549
  %v577 = vadd.f32 %v533, %v549
  %v578 = vadd.f32 %v535, %v549
  %v579 = vadd.f32 %v538, %v549
  %v580 = vadd.f32 %v540, %v549
  %v581 = vadd.f32 %v543, %v549
  %v582 = vadd.f32 %v545, %v549
  %v583 = vmax.f32 %v551, 0.0
  %v584 = vmax.f32 %v552, 0.0
  %v585 = vmax.f32 %v553, 0.0
  %v586 = vmax.f32 %v554, 0.0
  %v587 = vmax.f32 %v555, 0.0
  %v588 = vmax.f32 %v556, 0.0
  %v589 = vmax.f32 %v557, 0.0
  %v590 = vmax.f32 %v558, 0.0
  %v591 = vmax.f32 %v559, 0.0
  %v592 = vmax.f32 %v560, 0.0
  %v593 = vmax.f32 %v561, 0.0
  %v594 = vmax.f32 %v562, 0.0
  %v595 = vmax.f32 %v563, 0.0
  %v596 = vmax.f32 %v564, 0.0
  %v597 = vmax.f32 %v565, 0.0
  %v598 = vmax.f32 %v566, 0.0
  %v599 = vmax.f32 %v567, 0.0
  %v600 = vmax.f32 %v568, 0.0
  %v601 = vmax.f32 %v569, 0.0
  %v602 = vmax.f32 %v570, 0.0
  %v603 = vmax.f32 %v571, 0.0
  %v604 = vmax.f32 %v572, 0.0
  %v605 = vmax.f32 %v573, 0.0
  %v606 = vmax.f32 %v574, 0.0
  %v607 = vmax.f32 %v575, 0.0
  %v608 = vmax.f32 %v576, 0.0
  %v609 = vmax.f32 %v577, 0.0
  %v610 = vmax.f32 %v578, 0.0
  %v611 = vmax.f32 %v579, 0.0
  %v612 = vmax.f32 %v580, 0.0
  %v613 = vmax.f32 %v581, 0.0
  %v614 = vmax.f32 %v582, 0.0
  %v615 = vpack.c.bf16 %v584, %v583
  %v616 = vpack.c.bf16 %v586, %v585
  %v617 = vpack.c.bf16 %v588, %v587
  %v618 = vpack.c.bf16 %v590, %v589
  %v619 = vpack.c.bf16 %v592, %v591
  %v620 = vpack.c.bf16 %v594, %v593
  %v621 = vpack.c.bf16 %v596, %v595
  %v622 = vpack.c.bf16 %v598, %v597
  %v623 = vpack.c.bf16 %v600, %v599
  %v624 = vpack.c.bf16 %v602, %v601
  %v625 = vpack.c.bf16 %v604, %v603
  %v626 = vpack.c.bf16 %v606, %v605
  %v627 = vpack.c.bf16 %v608, %v607
  %v628 = vpack.c.bf16 %v610, %v609
  %v629 = vpack.c.bf16 %v612, %v611
  %v630 = vpack.c.bf16 %v614, %v613
  %v631 = vld [vmem:[%s5] sm:$0xf]
  %v632 = vld [vmem:[%s5 + $0x4] sm:$0xf]
  %v633 = vld [vmem:[%s5 + $0x8] sm:$0xf]
  %v634 = vld [vmem:[%s5 + $0xc] sm:$0xf]
  %v635 = vld [vmem:[%s5 + $0x10] sm:$0xf]
  %v636 = vld [vmem:[%s5 + $0x14] sm:$0xf]
  %v637 = vld [vmem:[%s5 + $0x18] sm:$0xf]
  %v638 = vld [vmem:[%s5 + $0x1c] sm:$0xf]
  %v639 = vld [vmem:[%s5 + $0x20] sm:$0xf]
  %v640 = vld [vmem:[%s5 + $0x24] sm:$0xf]
  %v641 = vld [vmem:[%s5 + $0x28] sm:$0xf]
  %v642 = vld [vmem:[%s5 + $0x2c] sm:$0xf]
  %v643 = vld [vmem:[%s5 + $0x30] sm:$0xf]
  %v644 = vld [vmem:[%s5 + $0x34] sm:$0xf]
  %v645 = vld [vmem:[%s5 + $0x38] sm:$0xf]
  %v646 = vld [vmem:[%s5 + $0x3c] sm:$0xf]
  %v647 = vld [vmem:[%s6] sm:$0x1]
  %v649 = vperm.slane %v647, 0
  %v667 = vunpack.c.l.b16 %v631
  %v668 = vunpack.c.l.b16 %v632
  %v669 = vunpack.c.l.b16 %v633
  %v670 = vunpack.c.l.b16 %v634
  %v671 = vunpack.c.l.b16 %v635
  %v672 = vunpack.c.l.b16 %v636
  %v673 = vunpack.c.l.b16 %v637
  %v674 = vunpack.c.l.b16 %v638
  %v675 = vunpack.c.l.b16 %v639
  %v676 = vunpack.c.l.b16 %v640
  %v677 = vunpack.c.l.b16 %v641
  %v678 = vunpack.c.l.b16 %v642
  %v679 = vunpack.c.l.b16 %v643
  %v680 = vunpack.c.l.b16 %v644
  %v681 = vunpack.c.l.b16 %v645
  %v682 = vunpack.c.l.b16 %v646
  %v683 = vpack.c.b16 %v668, %v667
  %v684 = vpack.c.b16 %v670, %v669
  %v685 = vpack.c.b16 %v672, %v671
  %v686 = vpack.c.b16 %v674, %v673
  %v687 = vpack.c.b16 %v676, %v675
  %v688 = vpack.c.b16 %v678, %v677
  %v689 = vpack.c.b16 %v680, %v679
  %v690 = vpack.c.b16 %v682, %v681
  %699 = vmatpush.bf16.msra.mxu0 %v690
  %700 = vmatpush.bf16.msra.mxu0 %v689
  %701 = vmatpush.bf16.msra.mxu0 %v688
  %702 = vmatpush.bf16.msra.mxu0 %v687
  %703 = vmatpush.bf16.msra.mxu0 %v686
  %704 = vmatpush.bf16.msra.mxu0 %v685
  %705 = vmatpush.bf16.msra.mxu0 %v684
  %706 = vmatpush.bf16.msra.mxu0 %v683
  %707 = vmatmul.bf16.gmra.mxu0 %v615
  %v708 = vpop.f32.mrf.mxu0
  %v709 = vadd.f32 %v649, %v708
  %v710 = vpop.f32.mrf.mxu0
  %v711 = vadd.f32 %v649, %v710
  %712 = vmatmul.bf16.gmra.mxu0 %v616
  %v713 = vpop.f32.mrf.mxu0
  %v714 = vadd.f32 %v649, %v713
  %v715 = vpop.f32.mrf.mxu0
  %v716 = vadd.f32 %v649, %v715
  %717 = vmatmul.bf16.gmra.mxu0 %v617
  %v718 = vpop.f32.mrf.mxu0
  %v719 = vadd.f32 %v649, %v718
  %v720 = vpop.f32.mrf.mxu0
  %v721 = vadd.f32 %v649, %v720
  %722 = vmatmul.bf16.gmra.mxu0 %v618
  %v723 = vpop.f32.mrf.mxu0
  %v724 = vadd.f32 %v649, %v723
  %v725 = vpop.f32.mrf.mxu0
  %v726 = vadd.f32 %v649, %v725
  %727 = vmatmul.bf16.gmra.mxu0 %v619
  %v728 = vpop.f32.mrf.mxu0
  %v729 = vadd.f32 %v649, %v728
  %v730 = vpop.f32.mrf.mxu0
  %v731 = vadd.f32 %v649, %v730
  %732 = vmatmul.bf16.gmra.mxu0 %v620
  %v733 = vpop.f32.mrf.mxu0
  %v734 = vadd.f32 %v649, %v733
  %v735 = vpop.f32.mrf.mxu0
  %v736 = vadd.f32 %v649, %v735
  %737 = vmatmul.bf16.gmra.mxu0 %v621
  %v738 = vpop.f32.mrf.mxu0
  %v739 = vadd.f32 %v649, %v738
  %v740 = vpop.f32.mrf.mxu0
  %v741 = vadd.f32 %v649, %v740
  %742 = vmatmul.bf16.gmra.mxu0 %v622
  %v743 = vpop.f32.mrf.mxu0
  %v744 = vadd.f32 %v649, %v743
  %v745 = vpop.f32.mrf.mxu0
  %v746 = vadd.f32 %v649, %v745
  %747 = vmatmul.bf16.gmra.mxu0 %v623
  %v748 = vpop.f32.mrf.mxu0
  %v749 = vadd.f32 %v649, %v748
  %v750 = vpop.f32.mrf.mxu0
  %v751 = vadd.f32 %v649, %v750
  %752 = vmatmul.bf16.gmra.mxu0 %v624
  %v753 = vpop.f32.mrf.mxu0
  %v754 = vadd.f32 %v649, %v753
  %v755 = vpop.f32.mrf.mxu0
  %v756 = vadd.f32 %v649, %v755
  %757 = vmatmul.bf16.gmra.mxu0 %v625
  %v758 = vpop.f32.mrf.mxu0
  %v759 = vadd.f32 %v649, %v758
  %v760 = vpop.f32.mrf.mxu0
  %v761 = vadd.f32 %v649, %v760
  %762 = vmatmul.bf16.gmra.mxu0 %v626
  %v763 = vpop.f32.mrf.mxu0
  %v764 = vadd.f32 %v649, %v763
  %v765 = vpop.f32.mrf.mxu0
  %v766 = vadd.f32 %v649, %v765
  %767 = vmatmul.bf16.gmra.mxu0 %v627
  %v768 = vpop.f32.mrf.mxu0
  %v769 = vadd.f32 %v649, %v768
  %v770 = vpop.f32.mrf.mxu0
  %v771 = vadd.f32 %v649, %v770
  %772 = vmatmul.bf16.gmra.mxu0 %v628
  %v773 = vpop.f32.mrf.mxu0
  %v774 = vadd.f32 %v649, %v773
  %v775 = vpop.f32.mrf.mxu0
  %v776 = vadd.f32 %v649, %v775
  %777 = vmatmul.bf16.gmra.mxu0 %v629
  %v778 = vpop.f32.mrf.mxu0
  %v779 = vadd.f32 %v649, %v778
  %v780 = vpop.f32.mrf.mxu0
  %v781 = vadd.f32 %v649, %v780
  %782 = vmatmul.bf16.gmra.mxu0 %v630
  %v783 = vpop.f32.mrf.mxu0
  %v784 = vadd.f32 %v649, %v783
  %v785 = vpop.f32.mrf.mxu0
  %v786 = vadd.f32 %v649, %v785
  %787 = vdwg.mxu0
  %v788 = vmax.f32 %v709, 0.0
  %v789 = vmax.f32 %v711, 0.0
  %v790 = vmax.f32 %v714, 0.0
  %v791 = vmax.f32 %v716, 0.0
  %v792 = vmax.f32 %v719, 0.0
  %v793 = vmax.f32 %v721, 0.0
  %v794 = vmax.f32 %v724, 0.0
  %v795 = vmax.f32 %v726, 0.0
  %v796 = vmax.f32 %v729, 0.0
  %v797 = vmax.f32 %v731, 0.0
  %v798 = vmax.f32 %v734, 0.0
  %v799 = vmax.f32 %v736, 0.0
  %v800 = vmax.f32 %v739, 0.0
  %v801 = vmax.f32 %v741, 0.0
  %v802 = vmax.f32 %v744, 0.0
  %v803 = vmax.f32 %v746, 0.0
  %v804 = vmax.f32 %v749, 0.0
  %v805 = vmax.f32 %v751, 0.0
  %v806 = vmax.f32 %v754, 0.0
  %v807 = vmax.f32 %v756, 0.0
  %v808 = vmax.f32 %v759, 0.0
  %v809 = vmax.f32 %v761, 0.0
  %v810 = vmax.f32 %v764, 0.0
  %v811 = vmax.f32 %v766, 0.0
  %v812 = vmax.f32 %v769, 0.0
  %v813 = vmax.f32 %v771, 0.0
  %v814 = vmax.f32 %v774, 0.0
  %v815 = vmax.f32 %v776, 0.0
  %v816 = vmax.f32 %v779, 0.0
  %v817 = vmax.f32 %v781, 0.0
  %v818 = vmax.f32 %v784, 0.0
  %v819 = vmax.f32 %v786, 0.0
  %v820 = vld [vmem:[%s7] sm:$0x1]
  %v822 = vperm.slane %v820, 0
  %v824 = vmul.f32 %v788, %v822
  %v825 = vmul.f32 %v789, %v822
  %v826 = vmul.f32 %v790, %v822
  %v827 = vmul.f32 %v791, %v822
  %v828 = vmul.f32 %v792, %v822
  %v829 = vmul.f32 %v793, %v822
  %v830 = vmul.f32 %v794, %v822
  %v831 = vmul.f32 %v795, %v822
  %v832 = vmul.f32 %v796, %v822
  %v833 = vmul.f32 %v797, %v822
  %v834 = vmul.f32 %v798, %v822
  %v835 = vmul.f32 %v799, %v822
  %v836 = vmul.f32 %v800, %v822
  %v837 = vmul.f32 %v801, %v822
  %v838 = vmul.f32 %v802, %v822
  %v839 = vmul.f32 %v803, %v822
  %v840 = vmul.f32 %v804, %v822
  %v841 = vmul.f32 %v805, %v822
  %v842 = vmul.f32 %v806, %v822
  %v843 = vmul.f32 %v807, %v822
  %v844 = vmul.f32 %v808, %v822
  %v845 = vmul.f32 %v809, %v822
  %v846 = vmul.f32 %v810, %v822
  %v847 = vmul.f32 %v811, %v822
  %v848 = vmul.f32 %v812, %v822
  %v849 = vmul.f32 %v813, %v822
  %v850 = vmul.f32 %v814, %v822
  %v851 = vmul.f32 %v815, %v822
  %v852 = vmul.f32 %v816, %v822
  %v853 = vmul.f32 %v817, %v822
  %v854 = vmul.f32 %v818, %v822
  %v855 = vmul.f32 %v819, %v822
  %856 = vadd.xlane.f32.xlu0 %v824
  %v857 = vpop.xlane.xlu0 %856
  %858 = vadd.xlane.f32.xlu0 %v825
  %v859 = vpop.xlane.xlu0 %858
  %860 = vadd.xlane.f32.xlu0 %v826
  %v861 = vpop.xlane.xlu0 %860
  %862 = vadd.xlane.f32.xlu0 %v827
  %v863 = vpop.xlane.xlu0 %862
  %864 = vadd.xlane.f32.xlu0 %v828
  %v865 = vpop.xlane.xlu0 %864
  %866 = vadd.xlane.f32.xlu0 %v829
  %v867 = vpop.xlane.xlu0 %866
  %868 = vadd.xlane.f32.xlu0 %v830
  %v869 = vpop.xlane.xlu0 %868
  %870 = vadd.xlane.f32.xlu0 %v831
  %v871 = vpop.xlane.xlu0 %870
  %872 = vadd.xlane.f32.xlu0 %v832
  %v873 = vpop.xlane.xlu0 %872
  %874 = vadd.xlane.f32.xlu0 %v833
  %v875 = vpop.xlane.xlu0 %874
  %876 = vadd.xlane.f32.xlu0 %v834
  %v877 = vpop.xlane.xlu0 %876
  %878 = vadd.xlane.f32.xlu0 %v835
  %v879 = vpop.xlane.xlu0 %878
  %880 = vadd.xlane.f32.xlu0 %v836
  %v881 = vpop.xlane.xlu0 %880
  %882 = vadd.xlane.f32.xlu0 %v837
  %v883 = vpop.xlane.xlu0 %882
  %884 = vadd.xlane.f32.xlu0 %v838
  %v885 = vpop.xlane.xlu0 %884
  %886 = vadd.xlane.f32.xlu0 %v839
  %v887 = vpop.xlane.xlu0 %886
  %888 = vadd.xlane.f32.xlu0 %v840
  %v889 = vpop.xlane.xlu0 %888
  %890 = vadd.xlane.f32.xlu0 %v841
  %v891 = vpop.xlane.xlu0 %890
  %892 = vadd.xlane.f32.xlu0 %v842
  %v893 = vpop.xlane.xlu0 %892
  %894 = vadd.xlane.f32.xlu0 %v843
  %v895 = vpop.xlane.xlu0 %894
  %896 = vadd.xlane.f32.xlu0 %v844
  %v897 = vpop.xlane.xlu0 %896
  %898 = vadd.xlane.f32.xlu0 %v845
  %v899 = vpop.xlane.xlu0 %898
  %900 = vadd.xlane.f32.xlu0 %v846
  %v901 = vpop.xlane.xlu0 %900
  %902 = vadd.xlane.f32.xlu0 %v847
  %v903 = vpop.xlane.xlu0 %902
  %904 = vadd.xlane.f32.xlu0 %v848
  %v905 = vpop.xlane.xlu0 %904
  %906 = vadd.xlane.f32.xlu0 %v849
  %v907 = vpop.xlane.xlu0 %906
  %908 = vadd.xlane.f32.xlu0 %v850
  %v909 = vpop.xlane.xlu0 %908
  %910 = vadd.xlane.f32.xlu0 %v851
  %v911 = vpop.xlane.xlu0 %910
  %912 = vadd.xlane.f32.xlu0 %v852
  %v913 = vpop.xlane.xlu0 %912
  %914 = vadd.xlane.f32.xlu0 %v853
  %v915 = vpop.xlane.xlu0 %914
  %916 = vadd.xlane.f32.xlu0 %v854
  %v917 = vpop.xlane.xlu0 %916
  %918 = vadd.xlane.f32.xlu0 %v855
  %v919 = vpop.xlane.xlu0 %918
  %s920 = sld [smem:[#allocation2]]
  %v921 = vstv %s920
  %v922 = vadd.f32 %v857, %v921
  %v923 = vadd.f32 %v859, %v921
  %v924 = vadd.f32 %v861, %v921
  %v925 = vadd.f32 %v863, %v921
  %v926 = vadd.f32 %v865, %v921
  %v927 = vadd.f32 %v867, %v921
  %v928 = vadd.f32 %v869, %v921
  %v929 = vadd.f32 %v871, %v921
  %v930 = vadd.f32 %v873, %v921
  %v931 = vadd.f32 %v875, %v921
  %v932 = vadd.f32 %v877, %v921
  %v933 = vadd.f32 %v879, %v921
  %v934 = vadd.f32 %v881, %v921
  %v935 = vadd.f32 %v883, %v921
  %v936 = vadd.f32 %v885, %v921
  %v937 = vadd.f32 %v887, %v921
  %v938 = vadd.f32 %v889, %v921
  %v939 = vadd.f32 %v891, %v921
  %v940 = vadd.f32 %v893, %v921
  %v941 = vadd.f32 %v895, %v921
  %v942 = vadd.f32 %v897, %v921
  %v943 = vadd.f32 %v899, %v921
  %v944 = vadd.f32 %v901, %v921
  %v945 = vadd.f32 %v903, %v921
  %v946 = vadd.f32 %v905, %v921
  %v947 = vadd.f32 %v907, %v921
  %v948 = vadd.f32 %v909, %v921
  %v949 = vadd.f32 %v911, %v921
  %v950 = vadd.f32 %v913, %v921
  %v951 = vadd.f32 %v915, %v921
  %v952 = vadd.f32 %v917, %v921
  %v953 = vadd.f32 %v919, %v921
  %vm954 = vcmask 7168
  %955 = vst.msk [vmem:[%s9] sm:$0xff] %vm954, %v922
  %956 = vst.msk [vmem:[%s9 + $0x8] sm:$0xff] %vm954, %v923
  %957 = vst.msk [vmem:[%s9 + $0x10] sm:$0xff] %vm954, %v924
  %958 = vst.msk [vmem:[%s9 + $0x18] sm:$0xff] %vm954, %v925
  %959 = vst.msk [vmem:[%s9 + $0x20] sm:$0xff] %vm954, %v926
  %960 = vst.msk [vmem:[%s9 + $0x28] sm:$0xff] %vm954, %v927
  %961 = vst.msk [vmem:[%s9 + $0x30] sm:$0xff] %vm954, %v928
  %962 = vst.msk [vmem:[%s9 + $0x38] sm:$0xff] %vm954, %v929
  %963 = vst.msk [vmem:[%s9 + $0x40] sm:$0xff] %vm954, %v930
  %964 = vst.msk [vmem:[%s9 + $0x48] sm:$0xff] %vm954, %v931
  %965 = vst.msk [vmem:[%s9 + $0x50] sm:$0xff] %vm954, %v932
  %966 = vst.msk [vmem:[%s9 + $0x58] sm:$0xff] %vm954, %v933
  %967 = vst.msk [vmem:[%s9 + $0x60] sm:$0xff] %vm954, %v934
  %968 = vst.msk [vmem:[%s9 + $0x68] sm:$0xff] %vm954, %v935
  %969 = vst.msk [vmem:[%s9 + $0x70] sm:$0xff] %vm954, %v936
  %970 = vst.msk [vmem:[%s9 + $0x78] sm:$0xff] %vm954, %v937
  %971 = vst.msk [vmem:[%s9 + $0x80] sm:$0xff] %vm954, %v938
  %972 = vst.msk [vmem:[%s9 + $0x88] sm:$0xff] %vm954, %v939
  %973 = vst.msk [vmem:[%s9 + $0x90] sm:$0xff] %vm954, %v940
  %974 = vst.msk [vmem:[%s9 + $0x98] sm:$0xff] %vm954, %v941
  %975 = vst.msk [vmem:[%s9 + $0xa0] sm:$0xff] %vm954, %v942
  %976 = vst.msk [vmem:[%s9 + $0xa8] sm:$0xff] %vm954, %v943
  %977 = vst.msk [vmem:[%s9 + $0xb0] sm:$0xff] %vm954, %v944
  %978 = vst.msk [vmem:[%s9 + $0xb8] sm:$0xff] %vm954, %v945
  %979 = vst.msk [vmem:[%s9 + $0xc0] sm:$0xff] %vm954, %v946
  %980 = vst.msk [vmem:[%s9 + $0xc8] sm:$0xff] %vm954, %v947
  %981 = vst.msk [vmem:[%s9 + $0xd0] sm:$0xff] %vm954, %v948
  %982 = vst.msk [vmem:[%s9 + $0xd8] sm:$0xff] %vm954, %v949
  %983 = vst.msk [vmem:[%s9 + $0xe0] sm:$0xff] %vm954, %v950
  %984 = vst.msk [vmem:[%s9 + $0xe8] sm:$0xff] %vm954, %v951
  %985 = vst.msk [vmem:[%s9 + $0xf0] sm:$0xff] %vm954, %v952
  %986 = vst.msk [vmem:[%s9 + $0xf8] sm:$0xff] %vm954, %v953
  // Predicated region
  $region38: #{critic_forward.1} parent=0 // pred_check
    _
  $region39: #{critic_forward.1} parent=0 // pred_check_branch
    %988 = sbr.rel (0) target = $region41
  $region40: #{critic_forward.1} parent=0 // pred_region
    _
  $region41: #{critic_forward.1} parent=0 // pred_fallthru
    _
  // Predicated region
  $region42: #{critic_forward.1} parent=0 // pred_check
    _
  $region43: #{critic_forward.1} parent=0 // pred_check_branch
    %990 = sbr.rel (0) target = $region45
  $region44: #{critic_forward.1} parent=0 // pred_region
    _
  $region45: #{critic_forward.1} parent=0 // pred_fallthru
    _

</llo_original>
